<compile_context>
chip_gen: v5e
topology: v5e:2x2
jax: 0.10.0
libtpu: 0.0.40
codegen_flags: <defaults>
</compile_context>

<pallas_src>
import functools

import numpy as np
import jax
import jax.numpy as jnp
from jax import lax
from jax.experimental import pallas as pl
from jax.experimental.pallas import tpu as pltpu


def _round_up(a, b):
    return ((a + b - 1) // b) * b


# --------------------------------------------------------------------------
# Kernel 1: fused lin_l | lin_r projection  (x -> x_l, x_r as bf16, lane-padded)
# --------------------------------------------------------------------------
def _proj_kernel(x_ref, w_lr_ref, b_lr_ref, xl_ref, xr_ref, *, hcp):
    xlr = jnp.dot(x_ref[...], w_lr_ref[...],
                  preferred_element_type=jnp.float32) + b_lr_ref[...]
    xl_ref[...] = xlr[:, :hcp].astype(jnp.bfloat16)     # split point is 128-aligned
    xr_ref[...] = xlr[:, hcp:].astype(jnp.bfloat16)


# --------------------------------------------------------------------------
# Kernel 2: GATv2 attention + aggregation
#   grid = (node_tiles [parallel], edge_tiles_per_node_tile [arbitrary])
#   Each edge tile belongs to exactly one node tile (dst-bucketed layout).
# --------------------------------------------------------------------------
def _gat_fused_kernel(xl_ref, xr_ref, w_edge_ref, eattr_ref, ebias_ref,
                      src_ref, dst_ref, attb_ref, headmean_ref, bias_ref,
                      o_ref,
                      m_sc, l_sc, acc_sc, *, neg_slope):
    j = pl.program_id(1)

    @pl.when(j == 0)
    def _init():
        m_sc[...] = jnp.full_like(m_sc, -1e30)
        l_sc[...] = jnp.zeros_like(l_sc)
        acc_sc[...] = jnp.zeros_like(acc_sc)

    # int8 one-hots from HBM -> bf16 MXU operands (exact for 0/1)
    src = src_ref[...].astype(jnp.float32).astype(jnp.bfloat16)      # [TE, Npad]
    dst = dst_ref[...].astype(jnp.float32).astype(jnp.bfloat16)      # [TE, TN] (tile-local)

    # gathers via one-hot matmuls (bf16 operands, f32 accumulation)
    x_j = jnp.dot(src, xl_ref[...], preferred_element_type=jnp.float32)   # [TE, HCp]
    x_i = jnp.dot(dst, xr_ref[...], preferred_element_type=jnp.float32)   # [TE, HCp]
    e_f = jnp.dot(eattr_ref[...], w_edge_ref[...],
                  preferred_element_type=jnp.float32)                     # [TE, HCp]

    m = x_j + x_i + e_f
    m = jnp.where(m > 0, m, neg_slope * m)                # leaky_relu(0.2)
    # per-head logits replicated over each head's C lanes (block-diagonal att matmul)
    logit = jnp.dot(m.astype(jnp.bfloat16), attb_ref[...],
                    preferred_element_type=jnp.float32)                   # [TE, HCp]
    # precomputed validity bias: 0 for real edges, -1e30 for dead/padded slots
    masked = logit + ebias_ref[...]                                       # [TE, HCp]

    # online softmax across edge tiles (running per-tile max / denom / accumulator)
    m_old = m_sc[...]
    m_new = jnp.maximum(m_old, jnp.max(masked, axis=0, keepdims=True))    # [1, HCp]
    corr = jnp.exp(m_old - m_new)
    ez = jnp.exp(masked - m_new)                                          # [TE, HCp]
    # dead edges have all-zero dst one-hot rows, so the scatter drops them regardless.

    ez_b = ez.astype(jnp.bfloat16)
    wx_b = (x_j * ez).astype(jnp.bfloat16)
    l_sc[...] = corr * l_sc[...] + lax.dot_general(
        dst, ez_b, (((0,), (0,)), ((), ())),
        preferred_element_type=jnp.float32)                               # [TN, HCp]
    acc_sc[...] = corr * acc_sc[...] + lax.dot_general(
        dst, wx_b, (((0,), (0,)), ((), ())),
        preferred_element_type=jnp.float32)                               # [TN, HCp]
    m_sc[...] = m_new

    @pl.when(j == pl.num_programs(1) - 1)
    def _finalize():
        alpha_x = acc_sc[...] / jnp.maximum(l_sc[...], 1e-30)
        out = jnp.dot(alpha_x, headmean_ref[...],
                      preferred_element_type=jnp.float32) + bias_ref[...]
        o_ref[...] = out.astype(o_ref.dtype)


# --------------------------------------------------------------------------
# Kernel 3: relations path: relu(gnn.lin_edge(relations)) -> block.lin_edge(...)
# --------------------------------------------------------------------------
def _relations_kernel(rel_ref, w_edge_ref, w2_ref, b2_ref, o_ref):
    h = jnp.dot(rel_ref[...], w_edge_ref[...], preferred_element_type=jnp.float32)
    h = jnp.maximum(h, 0.0).astype(jnp.bfloat16)
    y = jnp.dot(h, w2_ref[...], preferred_element_type=jnp.float32) + b2_ref[...]
    o_ref[...] = y.astype(o_ref.dtype)


# --------------------------------------------------------------------------
# Host-side edge structure construction (numpy, runs once per graph):
#   remove_self_loops + add_self_loops(fill_value='mean'), then bucket edges by
#   target-node tile.  Each node tile gets a uniform, te-aligned slot range; dead
#   slots carry zero one-hots and a -1e30 logit bias.
# --------------------------------------------------------------------------
def build_edge_structures(n_nodes, n_pad, tn, edge_index, edge_attr, te):
    n = n_nodes
    n_tiles = n_pad // tn
    src = np.asarray(edge_index[0])
    dst = np.asarray(edge_index[1])
    attr = np.asarray(edge_attr, dtype=np.float32)
    din = attr.shape[1]
    keep = src != dst

    # self-loop fill value: mean of incoming (kept) edge attrs per target node
    loop_attr = np.zeros((n, din), np.float32)
    cnt = np.zeros((n,), np.float32)
    np.add.at(loop_attr, dst[keep], attr[keep])
    np.add.at(cnt, dst[keep], 1.0)
    loop_attr /= np.maximum(cnt, 1.0)[:, None]

    node_ids = np.arange(n)
    src_all = np.concatenate([src, node_ids])
    dst_all = np.concatenate([dst, node_ids])
    attr_all = np.concatenate([attr, loop_attr], 0)
    valid_all = np.concatenate([keep.astype(np.float32), np.ones(n, np.float32)])
    et = src_all.shape[0]

    bucket = dst_all // tn                                   # target node tile per edge
    counts = np.bincount(bucket, minlength=n_tiles)
    epn = max(te, _round_up(int(counts.max()), te))          # edge slots per node tile
    e_tot = n_tiles * epn

    order = np.argsort(bucket, kind="stable")
    bucket_s = bucket[order]
    csum = np.concatenate([np.zeros(1, np.int64), np.cumsum(counts)])
    rank_s = np.arange(et) - csum[bucket_s]
    slot = bucket_s * epn + rank_s                           # unique slot per edge

    eattr = np.zeros((e_tot, din), np.float32)
    ebias = np.full((e_tot, 1), -1e30, np.float32)
    src_oh = np.zeros((e_tot, n_pad), np.int8)
    dst_oh = np.zeros((e_tot, tn), np.int8)

    es, ed, ev, ea = src_all[order], dst_all[order], valid_all[order], attr_all[order]
    eattr[slot] = ea
    ebias[slot, 0] = np.where(ev > 0, 0.0, -1e30)
    vmask = ev > 0
    vslot = slot[vmask]
    src_oh[vslot, es[vmask]] = 1
    dst_oh[vslot, ed[vmask] - bucket_s[vmask] * tn] = 1      # tile-local column

    epn_tiles = epn // te
    return (jnp.asarray(src_oh), jnp.asarray(dst_oh),
            jnp.asarray(eattr).astype(jnp.bfloat16), jnp.asarray(ebias), epn_tiles)


# --------------------------------------------------------------------------
# GATBlock forward (glue in plain JAX/numpy, hot path in three Pallas kernels)
# --------------------------------------------------------------------------
def gat_block_forward(params, x, edge_index, relations, relation_index, *,
                      node_tile=128, edge_tile=256,
                      vmem_limit_bytes=48 * 1024 * 1024):
    f32, bf16 = jnp.float32, jnp.bfloat16
    n_head, out_dim = params["n_head"], params["out_dim"]
    hc = n_head * out_dim
    hcp = _round_up(hc, 128)           # lane-padded per-head width
    cp = _round_up(out_dim, 128)       # lane-padded output width
    n, din = x.shape

    tn = min(node_tile, _round_up(n, 16))
    n_pad = _round_up(n, tn)
    n_tiles = n_pad // tn
    te = max(32, _round_up(edge_tile, 32))     # int8 sublane packing

    edge_attr = relations[relation_index]                         # [E, Din]
    src_oh, dst_oh, eattr, ebias, epn_tiles = build_edge_structures(
        n, n_pad, tn, edge_index, edge_attr, te)

    # ---- padded / fused constant operands --------------------------------
    def pad_cols(w, width):
        return jnp.pad(w, ((0, 0), (0, width - w.shape[1])))

    w_lr = jnp.concatenate([pad_cols(params["w_l"], hcp),
                            pad_cols(params["w_r"], hcp)], axis=1).astype(bf16)
    b_lr = jnp.concatenate([jnp.pad(params["b_l"], (0, hcp - hc)),
                            jnp.pad(params["b_r"], (0, hcp - hc))]
                           ).reshape(1, 2 * hcp).astype(f32)
    w_edge = pad_cols(params["w_edge"], hcp).astype(bf16)                  # [Din, HCp]

    att = params["att"].astype(f32)                                        # [H, C]
    att_rep = (jnp.eye(n_head, dtype=f32)[:, None, :, None]
               * att[:, :, None, None]
               * jnp.ones((1, 1, 1, out_dim), f32)).reshape(hc, hc)
    att_block = jnp.zeros((hcp, hcp), f32).at[:hc, :hc].set(att_rep).astype(bf16)
    headmean = jnp.tile(jnp.eye(out_dim, dtype=f32), (n_head, 1)) / n_head
    headmean = jnp.pad(headmean, ((0, hcp - hc), (0, cp - out_dim)))       # [HCp, Cp]
    bias = jnp.pad(params["bias_gnn"].astype(f32), (0, cp - out_dim)).reshape(1, cp)

    x_pad = jnp.pad(x, ((0, n_pad - n), (0, 0))).astype(bf16)

    # ---- kernel 1: lin_l | lin_r projection (once over all nodes) --------
    x_l, x_r = pl.pallas_call(
        functools.partial(_proj_kernel, hcp=hcp),
        out_shape=(jax.ShapeDtypeStruct((n_pad, hcp), bf16),
                   jax.ShapeDtypeStruct((n_pad, hcp), bf16)),
        grid=(n_tiles,),
        in_specs=[pl.BlockSpec((tn, din), lambda i: (i, 0)),
                  pl.BlockSpec((din, 2 * hcp), lambda i: (0, 0)),
                  pl.BlockSpec((1, 2 * hcp), lambda i: (0, 0))],
        out_specs=(pl.BlockSpec((tn, hcp), lambda i: (i, 0)),
                   pl.BlockSpec((tn, hcp), lambda i: (i, 0))),
        compiler_params=pltpu.CompilerParams(dimension_semantics=("parallel",)),
    )(x_pad, w_lr, b_lr)

    # ---- kernel 2: attention + aggregation --------------------------------
    idx = lambda i, j: (i * epn_tiles + j, 0)
    kern = functools.partial(_gat_fused_kernel, neg_slope=0.2)
    x_out_pad = pl.pallas_call(
        kern,
        out_shape=jax.ShapeDtypeStruct((n_pad, cp), f32),
        grid_spec=pltpu.PrefetchScalarGridSpec(
            num_scalar_prefetch=0,
            grid=(n_tiles, epn_tiles),
            in_specs=[
                pl.BlockSpec((n_pad, hcp), lambda i, j: (0, 0)),   # x_l (all nodes, resident)
                pl.BlockSpec((tn, hcp), lambda i, j: (i, 0)),      # x_r (target tile)
                pl.BlockSpec((din, hcp), lambda i, j: (0, 0)),     # w_edge
                pl.BlockSpec((te, din), idx),                      # edge_attr tile
                pl.BlockSpec((te, 1), idx),                        # edge validity bias
                pl.BlockSpec((te, n_pad), idx),                    # src one-hot (int8)
                pl.BlockSpec((te, tn), idx),                       # dst one-hot (int8, local)
                pl.BlockSpec((hcp, hcp), lambda i, j: (0, 0)),     # block-diag att (bf16)
                pl.BlockSpec((hcp, cp), lambda i, j: (0, 0)),      # head-mean matrix
                pl.BlockSpec((1, cp), lambda i, j: (0, 0)),        # gnn bias (padded)
            ],
            out_specs=pl.BlockSpec((tn, cp), lambda i, j: (i, 0)),
            scratch_shapes=[
                pltpu.VMEM((1, hcp), f32),      # running per-tile max
                pltpu.VMEM((tn, hcp), f32),     # running softmax denominator
                pltpu.VMEM((tn, hcp), f32),     # running weighted-message accumulator
            ],
        ),
        compiler_params=pltpu.CompilerParams(
            dimension_semantics=("parallel", "arbitrary"),
            vmem_limit_bytes=vmem_limit_bytes),
    )(x_l, x_r, w_edge, eattr, ebias, src_oh, dst_oh, att_block, headmean, bias)
    x_out = x_out_pad[:n, :out_dim]

    # ---- kernel 3: relations path (tiny, single launch) -------------------
    n_rel = relations.shape[0]
    w2 = jnp.pad(params["w_lin2"], ((0, hcp - hc), (0, cp - out_dim))).astype(bf16)
    b2 = jnp.pad(params["b_lin2"], (0, cp - out_dim)).reshape(1, cp).astype(f32)
    rel_pad = pl.pallas_call(
        _relations_kernel,
        out_shape=jax.ShapeDtypeStruct((n_rel, cp), f32),
        grid=(1,),
        in_specs=[pl.BlockSpec((n_rel, din), lambda i: (0, 0)),
                  pl.BlockSpec((din, hcp), lambda i: (0, 0)),
                  pl.BlockSpec((hcp, cp), lambda i: (0, 0)),
                  pl.BlockSpec((1, cp), lambda i: (0, 0))],
        out_specs=pl.BlockSpec((n_rel, cp), lambda i: (0, 0)),
    )(relations.astype(bf16), w_edge, w2, b2)
    rel_out = rel_pad[:, :out_dim]
    return x_out, rel_out


# --------------------------------------------------------------------------
# Pure-JAX reference (same math & matching bf16 operand casts, no Pallas)
# --------------------------------------------------------------------------
def reference_forward(params, x, edge_index, relations, relation_index):
    f32, bf16 = jnp.float32, jnp.bfloat16
    H, C = params["n_head"], params["out_dim"]
    n = x.shape[0]
    src, dst = edge_index[0], edge_index[1]
    keep = src != dst
    edge_attr = relations[relation_index]

    node_ids = jnp.arange(n)
    inc = ((dst[:, None] == node_ids[None, :]) & keep[:, None]).astype(f32)
    loop_attr = (inc.T @ edge_attr) / jnp.maximum(inc.sum(0), 1.0)[:, None]

    src_a = jnp.concatenate([src[keep], node_ids])
    dst_a = jnp.concatenate([dst[keep], node_ids])
    attr_a = jnp.concatenate([edge_attr[keep], loop_attr], axis=0)

    xq = x.astype(bf16)
    x_l = (jnp.dot(xq, params["w_l"].astype(bf16), preferred_element_type=f32)
           + params["b_l"]).astype(bf16).astype(f32)
    x_r = (jnp.dot(xq, params["w_r"].astype(bf16), preferred_element_type=f32)
           + params["b_r"]).astype(bf16).astype(f32)
    e_f = jnp.dot(attr_a.astype(bf16), params["w_edge"].astype(bf16),
                  preferred_element_type=f32)

    E = src_a.shape[0]
    x_j = x_l[src_a]
    x_i = x_r[dst_a]
    m = x_j + x_i + e_f
    m = jnp.where(m > 0, m, 0.2 * m)

    att_q = params["att"].astype(bf16).astype(f32)                      # [H, C]
    m_q = m.reshape(E, H, C).astype(bf16).astype(f32)
    logits = jnp.einsum("ehc,hc->eh", m_q, att_q)                       # [E, H]

    dst_oh = (dst_a[:, None] == node_ids[None, :]).astype(f32)          # [E, n]
    lmax = jnp.max(jnp.where(dst_oh[:, :, None] > 0, logits[:, None, :], -1e30), axis=0)
    ez = jnp.exp(logits[:, None, :] - lmax[None, :, :]) * dst_oh[:, :, None]
    denom = ez.sum(0)                                                   # [n, H]
    acc = jnp.einsum("enh,ehc->nhc", ez, x_j.reshape(E, H, C))          # [n, H, C]
    alpha_x = acc / jnp.maximum(denom, 1e-30)[:, :, None]
    x_out = alpha_x.mean(axis=1) + params["bias_gnn"][None, :]

    rel_h = jnp.maximum(jnp.dot(relations.astype(bf16), params["w_edge"].astype(bf16),
                                preferred_element_type=f32), 0.0)
    rel_out = jnp.dot(rel_h.astype(bf16), params["w_lin2"].astype(bf16),
                      preferred_element_type=f32) + params["b_lin2"]
    return x_out, rel_out


# --------------------------------------------------------------------------
# Deterministic parameter init (shapes from GATBlock.__init__)
# --------------------------------------------------------------------------
def init_params(key, input_dim, out_dim, n_head):
    ks = jax.random.split(key, 8)
    hc = n_head * out_dim
    s = 0.1
    return dict(
        n_head=n_head, out_dim=out_dim,
        w_l=jax.random.normal(ks[0], (input_dim, hc), jnp.float32) * s,
        b_l=jax.random.normal(ks[1], (hc,), jnp.float32) * s,
        w_r=jax.random.normal(ks[2], (input_dim, hc), jnp.float32) * s,
        b_r=jax.random.normal(ks[3], (hc,), jnp.float32) * s,
        w_edge=jax.random.normal(ks[4], (input_dim, hc), jnp.float32) * s,  # gnn.lin_edge (no bias)
        att=jax.random.normal(ks[5], (n_head, out_dim), jnp.float32) * s,
        bias_gnn=jnp.zeros((out_dim,), jnp.float32),
        w_lin2=jax.random.normal(ks[6], (hc, out_dim), jnp.float32) * s,    # block.lin_edge
        b_lin2=jax.random.normal(ks[7], (out_dim,), jnp.float32) * s,
    )


if __name__ == "__main__":
    key = jax.random.PRNGKey(0)
    kx, ke, kr, kri, kp = jax.random.split(key, 5)

    num_nodes, num_edges, num_rel = 40, 160, 6
    input_dim, out_dim, n_head = 16, 32, 2

    x = jax.random.normal(kx, (num_nodes, input_dim), jnp.float32)
    edge_index = jax.random.randint(ke, (2, num_edges), 0, num_nodes)
    relations = jax.random.normal(kr, (num_rel, input_dim), jnp.float32)
    relation_index = jax.random.randint(kri, (num_edges,), 0, num_rel)

    params = init_params(kp, input_dim, out_dim, n_head)

    # node_tile=16 / edge_tile=32 -> grid of 3 node tiles x ~3 edge tiles per node tile,
    # exercising both the parallel node axis and the online-softmax edge axis.
    x_out, rel_out = gat_block_forward(params, x, edge_index, relations,
                                       relation_index, node_tile=16, edge_tile=32)
    jax.block_until_ready((x_out, rel_out))

    x_ref, rel_ref = reference_forward(params, x, edge_index, relations, relation_index)
    assert x_out.shape == (num_nodes, out_dim)
    assert rel_out.shape == (num_rel, out_dim)
    err_x = float(jnp.max(jnp.abs(x_out - x_ref)))
    err_r = float(jnp.max(jnp.abs(rel_out - rel_ref)))
    assert jnp.allclose(x_out, x_ref, atol=1e-2, rtol=1e-2), err_x
    assert jnp.allclose(rel_out, rel_ref, atol=1e-2, rtol=1e-2), err_r
    print("KERNEL_OK")
</pallas_src>

<mosaic_0001>
module attributes {stable_mosaic.version = 11 : i64} {
  func.func @_proj_kernel(%arg0: i32, %arg1: memref<16x16xbf16, #tpu.memory_space<vmem>>, %arg2: memref<16x256xbf16, #tpu.memory_space<vmem>>, %arg3: memref<1x256xf32, #tpu.memory_space<vmem>>, %arg4: memref<16x128xbf16, #tpu.memory_space<vmem>>, %arg5: memref<16x128xbf16, #tpu.memory_space<vmem>>) attributes {dimension_semantics = [#tpu.dimension_semantics<parallel>], iteration_bounds = array<i64: 3>, scalar_prefetch = 0 : i64, scratch_operands = 0 : i64, tpu.core_type = #tpu.core_type<tc>, window_params = [{transform_indices = @transform_0, window_bounds = array<i64: 16, 16>}, {pipeline_mode = #tpu.pipeline_mode<synchronous>, transform_indices = @transform_1, window_bounds = array<i64: 16, 256>}, {pipeline_mode = #tpu.pipeline_mode<synchronous>, transform_indices = @transform_2, window_bounds = array<i64: 1, 256>}, {transform_indices = @transform_3, window_bounds = array<i64: 16, 128>}, {transform_indices = @transform_4, window_bounds = array<i64: 16, 128>}]} {
    %c0 = arith.constant 0 : index
    %c0_0 = arith.constant 0 : index
    %0 = vector.load %arg1[%c0, %c0_0] : memref<16x16xbf16, #tpu.memory_space<vmem>>, vector<16x16xbf16>
    %c0_1 = arith.constant 0 : index
    %c0_2 = arith.constant 0 : index
    %1 = vector.load %arg2[%c0_1, %c0_2] : memref<16x256xbf16, #tpu.memory_space<vmem>>, vector<16x256xbf16>
    %cst = arith.constant dense<0.000000e+00> : vector<16x256xf32>
    %2 = tpu.matmul %0, %1, %cst {dimension_numbers = #tpu.dot_dimension_numbers<[1], [0], [0], [1], [0, 0, 1, 1], [], []>} : vector<16x16xbf16>, vector<16x256xbf16>, vector<16x256xf32> -> vector<16x256xf32>
    %c0_3 = arith.constant 0 : index
    %c0_4 = arith.constant 0 : index
    %3 = vector.load %arg3[%c0_3, %c0_4] : memref<1x256xf32, #tpu.memory_space<vmem>>, vector<1x256xf32>
    %4 = vector.broadcast %3 : vector<1x256xf32> to vector<16x256xf32>
    %5 = arith.addf %2, %4 : vector<16x256xf32>
    %6 = vector.extract_strided_slice %5 {offsets = [0, 0], sizes = [16, 128], strides = [1, 1]} : vector<16x256xf32> to vector<16x128xf32>
    %7 = arith.truncf %6 : vector<16x128xf32> to vector<16x128xbf16>
    %c0_5 = arith.constant 0 : index
    %c0_6 = arith.constant 0 : index
    %8 = vector.load %arg4[%c0_5, %c0_6] : memref<16x128xbf16, #tpu.memory_space<vmem>>, vector<16x128xbf16>
    tpu.vector_store %arg4[%c0_5, %c0_6], %7 {strides = array<i32>} : memref<16x128xbf16, #tpu.memory_space<vmem>>, vector<16x128xbf16>,
    %9 = vector.extract_strided_slice %5 {offsets = [0, 128], sizes = [16, 128], strides = [1, 1]} : vector<16x256xf32> to vector<16x128xf32>
    %10 = arith.truncf %9 : vector<16x128xf32> to vector<16x128xbf16>
    %c0_7 = arith.constant 0 : index
    %c0_8 = arith.constant 0 : index
    %11 = vector.load %arg5[%c0_7, %c0_8] : memref<16x128xbf16, #tpu.memory_space<vmem>>, vector<16x128xbf16>
    tpu.vector_store %arg5[%c0_7, %c0_8], %10 {strides = array<i32>} : memref<16x128xbf16, #tpu.memory_space<vmem>>, vector<16x128xbf16>,
    return
  }
  func.func @transform_0(%arg0: i32) -> (i32, i32) {
    %c0_i32 = arith.constant 0 : i32
    %c0_i32_0 = arith.constant 0 : i32
    return %arg0, %c0_i32 : i32, i32
  }
  func.func @transform_1(%arg0: i32) -> (i32, i32) {
    %c0_i32 = arith.constant 0 : i32
    %c0_i32_0 = arith.constant 0 : i32
    %c0_i32_1 = arith.constant 0 : i32
    return %c0_i32, %c0_i32_0 : i32, i32
  }
  func.func @transform_2(%arg0: i32) -> (i32, i32) {
    %c0_i32 = arith.constant 0 : i32
    %c0_i32_0 = arith.constant 0 : i32
    %c0_i32_1 = arith.constant 0 : i32
    return %c0_i32, %c0_i32_0 : i32, i32
  }
  func.func @transform_3(%arg0: i32) -> (i32, i32) {
    %c0_i32 = arith.constant 0 : i32
    %c0_i32_0 = arith.constant 0 : i32
    return %arg0, %c0_i32 : i32, i32
  }
  func.func @transform_4(%arg0: i32) -> (i32, i32) {
    %c0_i32 = arith.constant 0 : i32
    %c0_i32_0 = arith.constant 0 : i32
    return %arg0, %c0_i32 : i32, i32
  }
}

</mosaic_0001>

<llo_original>
// kernel: tpu_custom_call.1
$region0: #{tpu_custom_call.1}
  #allocation0 [shape = 'u32[]', space=smem, size = 0x4, offset = 0x4, fixed_abs, tag = 'smem constant byte address 0x4 - core index']
  #allocation1 [shape = 'u32[72,128]{1,0:T(1,128)}', space=vmem, size = 0x9000, scoped, tag = 'internal scratch']
  %s0 = inlined_call_operand.vmem [shape: bf16[48,16], index: 0, kind: input, shape index: {}]
  %s1 = inlined_call_operand.vmem [shape: bf16[16,256], index: 1, kind: input, shape index: {}]
  %s2 = inlined_call_operand.vmem [shape: f32[1,256], index: 2, kind: input, shape index: {}]
  %s3 = inlined_call_operand.hbm [shape: bf16[48,128], index: 3, kind: output, shape index: {0}]
  %s4 = inlined_call_operand.hbm [shape: bf16[48,128], index: 4, kind: output, shape index: {1}]
  %5 = xla_tuple %s3, %s4
  %s6 = sld [smem:[#allocation0]]
  $region53: #{tpu_custom_call.1} parent=0
    _
  %s8 = ssub.s32 1, %s6
  %s9 = scalar_select 0, %s8, %s6
  $region1: #{tpu_custom_call.1} parent=0
    #allocation2 [shape = 'u8[8192]{0}', space=vmem, size = 0x2000, scoped, tag = 'output window, operand 0']
    #allocation3 [shape = 's32[2]{0}', space=sflag, size = 0x8, scoped, tag = 'scoped memory for tpu_custom_call.1']
    #allocation4 [shape = 'u8[8192]{0}', space=vmem, size = 0x2000, scoped, tag = 'output window, operand 1']
    #allocation5 [shape = 's32[2]{0}', space=sflag, size = 0x8, scoped, tag = 'scoped memory for tpu_custom_call.1']
    %10 = vsyncpa [#allocation3], 0
    %s11 = scalar_lea.sflag [#allocation3], 1
    %12 = vsyncpa %s11, 0
    %13 = vsyncpa [#allocation5], 0
    %s14 = scalar_lea.sflag [#allocation5], 1
    %15 = vsyncpa %s14, 0
    loop: start=0, step=1, limit=5
    $region2: #{tpu_custom_call.1} parent=1 // loop_pre_header
      _
    $region3: #{tpu_custom_call.1} parent=1 // loop_header
      %s17 = sphi 0, %s21
      %p18 = scmp.ge.s32.totalorder %s17, 5
      %s27 = sphi 0, %s29
      %s30 = sphi 0, %s27
      %s31 = sphi 0, %s30
      %s47 = sphi 0, %s31
      %s51 = sphi 0, %s51
      %s53 = sphi 0, %s51
      %s54 = sphi 0, %s53
      %s68 = sphi 0, %s54
      %s72 = sphi 0, %s72
      %s74 = sphi 0, %s72
      %s75 = sphi 0, %s74
      %s89 = sphi 0, %s75
      %s95 = sphi 0, %s97
      %s98 = sphi 0, %s95
      %s99 = sphi 0, %s98
      %s115 = sphi 0, %s99
      %s121 = sphi 0, %s123
      %s124 = sphi 0, %s121
      %s125 = sphi 0, %s124
      %s141 = sphi 0, %s125
    $region4: #{tpu_custom_call.1} parent=1 // loop_header_branch
      %20 = sbr.rel (%p18) target = $region8
    $region5: #{tpu_custom_call.1} parent=1 // loop_body
      %s22 = ssub.s32 %s17, 1
      %s23 = ssub.s32 %s17, 2
      %s24 = sadd.s32 %s17, 1
      %s25 = ssub.s32 %s17, %s24
      %p26 = scmp.eq.s32.totalorder %s25, 0
      %s28 = sadd.s32 %s27, 1
      %s29 = scalar_select %p26, %s27, %s28
      %p32 = pneg %p26
      %p33 = scmp.eq.s32.totalorder %s17, 2
      %p34 = por %p32, %p33
      %p35 = scmp.ne.s32.totalorder %s27, %s30
      %p36 = scmp.eq.s32.totalorder %s17, 0
      %p37 = por %p35, %p36
      %p38 = scmp.ne.s32.totalorder %s27, %s30
      %p39 = scmp.eq.s32.totalorder %s22, 2
      %p40 = por %p38, %p39
      %p41 = scmp.ne.s32.totalorder %s30, %s31
      %p42 = scmp.eq.s32.totalorder %s22, 0
      %p43 = por %p41, %p42
      %p44 = scmp.ne.s32.totalorder %s30, %s31
      %p45 = scmp.eq.s32.totalorder %s23, 2
      %p46 = por %p44, %p45
      %p48 = scmp.ne.s32.totalorder %s31, %s47
      %p49 = scmp.eq.s32.totalorder %s23, 0
      %p50 = por %p48, %p49
      %s52 = sadd.s32 %s51, 1
      %p55 = scmp.eq.s32.totalorder %s17, 2
      %p56 = scmp.ne.s32.totalorder %s51, %s53
      %p57 = scmp.eq.s32.totalorder %s17, 0
      %p58 = por %p56, %p57
      %p59 = scmp.ne.s32.totalorder %s51, %s53
      %p60 = scmp.eq.s32.totalorder %s22, 2
      %p61 = por %p59, %p60
      %p62 = scmp.ne.s32.totalorder %s53, %s54
      %p63 = scmp.eq.s32.totalorder %s22, 0
      %p64 = por %p62, %p63
      %p65 = scmp.ne.s32.totalorder %s53, %s54
      %p66 = scmp.eq.s32.totalorder %s23, 2
      %p67 = por %p65, %p66
      %p69 = scmp.ne.s32.totalorder %s54, %s68
      %p70 = scmp.eq.s32.totalorder %s23, 0
      %p71 = por %p69, %p70
      %s73 = sadd.s32 %s72, 1
      %p76 = scmp.eq.s32.totalorder %s17, 2
      %p77 = scmp.ne.s32.totalorder %s72, %s74
      %p78 = scmp.eq.s32.totalorder %s17, 0
      %p79 = por %p77, %p78
      %p80 = scmp.ne.s32.totalorder %s72, %s74
      %p81 = scmp.eq.s32.totalorder %s22, 2
      %p82 = por %p80, %p81
      %p83 = scmp.ne.s32.totalorder %s74, %s75
      %p84 = scmp.eq.s32.totalorder %s22, 0
      %p85 = por %p83, %p84
      %p86 = scmp.ne.s32.totalorder %s74, %s75
      %p87 = scmp.eq.s32.totalorder %s23, 2
      %p88 = por %p86, %p87
      %p90 = scmp.ne.s32.totalorder %s75, %s89
      %p91 = scmp.eq.s32.totalorder %s23, 0
      %p92 = por %p90, %p91
      %s93 = ssub.s32 %s17, %s24
      %p94 = scmp.eq.s32.totalorder %s93, 0
      %s96 = sadd.s32 %s95, 1
      %s97 = scalar_select %p94, %s95, %s96
      %p100 = pneg %p94
      %p101 = scmp.eq.s32.totalorder %s17, 2
      %p102 = por %p100, %p101
      %p103 = scmp.ne.s32.totalorder %s95, %s98
      %p104 = scmp.eq.s32.totalorder %s17, 0
      %p105 = por %p103, %p104
      %p106 = scmp.ne.s32.totalorder %s95, %s98
      %p107 = scmp.eq.s32.totalorder %s22, 2
      %p108 = por %p106, %p107
      %p109 = scmp.ne.s32.totalorder %s98, %s99
      %p110 = scmp.eq.s32.totalorder %s22, 0
      %p111 = por %p109, %p110
      %p112 = scmp.ne.s32.totalorder %s98, %s99
      %p113 = scmp.eq.s32.totalorder %s23, 2
      %p114 = por %p112, %p113
      %p116 = scmp.ne.s32.totalorder %s99, %s115
      %p117 = scmp.eq.s32.totalorder %s23, 0
      %p118 = por %p116, %p117
      %s119 = ssub.s32 %s17, %s24
      %p120 = scmp.eq.s32.totalorder %s119, 0
      %s122 = sadd.s32 %s121, 1
      %s123 = scalar_select %p120, %s121, %s122
      %p126 = pneg %p120
      %p127 = scmp.eq.s32.totalorder %s17, 2
      %p128 = por %p126, %p127
      %p129 = scmp.ne.s32.totalorder %s121, %s124
      %p130 = scmp.eq.s32.totalorder %s17, 0
      %p131 = por %p129, %p130
      %p132 = scmp.ne.s32.totalorder %s121, %s124
      %p133 = scmp.eq.s32.totalorder %s22, 2
      %p134 = por %p132, %p133
      %p135 = scmp.ne.s32.totalorder %s124, %s125
      %p136 = scmp.eq.s32.totalorder %s22, 0
      %p137 = por %p135, %p136
      %p138 = scmp.ne.s32.totalorder %s124, %s125
      %p139 = scmp.eq.s32.totalorder %s23, 2
      %p140 = por %p138, %p139
      %p142 = scmp.ne.s32.totalorder %s125, %s141
      %p143 = scmp.eq.s32.totalorder %s23, 0
      %p144 = por %p142, %p143
      %p145 = scmp.le.s32.totalorder 1, %s17
      %p146 = scmp.lt.s32.totalorder %s17, 4
      %p147 = pnand %p145, %p146
      %p148 = pneg %p147
      // Predicated region
      $region9: #{tpu_custom_call.1} parent=5 // pred_check
        _
      $region10: #{tpu_custom_call.1} parent=5 // pred_check_branch
        %150 = sbr.rel (%p147) target = $region12
      $region11: #{tpu_custom_call.1} parent=5 // pred_region
        %s151 = ssub.s32 %s17, 1
        // Predicated region
        $region13: #{tpu_custom_call.1} parent=11 // pred_check
          %p152 = pneg %p64
        $region14: #{tpu_custom_call.1} parent=11 // pred_check_branch
          %154 = sbr.rel (%p152) target = $region16
        $region15: #{tpu_custom_call.1} parent=11 // pred_region
          _
        $region16: #{tpu_custom_call.1} parent=11 // pred_fallthru
          _
        // Predicated region
        $region17: #{tpu_custom_call.1} parent=11 // pred_check
          %p155 = pneg %p85
        $region18: #{tpu_custom_call.1} parent=11 // pred_check_branch
          %157 = sbr.rel (%p155) target = $region20
        $region19: #{tpu_custom_call.1} parent=11 // pred_region
          _
        $region20: #{tpu_custom_call.1} parent=11 // pred_fallthru
          _
      $region12: #{tpu_custom_call.1} parent=5 // pred_fallthru
        _
      %p158 = scmp.lt.s32.totalorder %s17, 3
      // Predicated region
      $region21: #{tpu_custom_call.1} parent=5 // pred_check
        %p159 = pneg %p158
      $region22: #{tpu_custom_call.1} parent=5 // pred_check_branch
        %161 = sbr.rel (%p159) target = $region24
      $region23: #{tpu_custom_call.1} parent=5 // pred_region
        // Predicated region
        $region25: #{tpu_custom_call.1} parent=23 // pred_check
          %p162 = pneg %p37
        $region26: #{tpu_custom_call.1} parent=23 // pred_check_branch
          %164 = sbr.rel (%p162) target = $region28
        $region27: #{tpu_custom_call.1} parent=23 // pred_region
          %s165 = smul.u32 2, %s17
          %p166 = scmp.lt.s32.totalorder %s165, 5
          %s167 = scalar_select %p166, %s165, 5
          %s168 = smul.addr %s167, 4
          %s169 = scalar_lea.vmem %s0, %s168
          %s170 = smul.u32 2, %s17
        $region28: #{tpu_custom_call.1} parent=23 // pred_fallthru
          _
      $region24: #{tpu_custom_call.1} parent=5 // pred_fallthru
        _
      %p171 = scmp.le.s32.totalorder 1, %s17
      %p172 = scmp.lt.s32.totalorder %s17, 4
      %p173 = pnand %p171, %p172
      %p174 = pneg %p173
      // Predicated region
      $region29: #{tpu_custom_call.1} parent=5 // pred_check
        _
      $region30: #{tpu_custom_call.1} parent=5 // pred_check_branch
        %176 = sbr.rel (%p173) target = $region32
      $region31: #{tpu_custom_call.1} parent=5 // pred_region
        %s177 = ssub.s32 %s17, 1
        %s178 = smul.u32 2, %s22
        %p179 = scmp.lt.s32.totalorder %s178, 5
        %s180 = scalar_select %p179, %s178, 5
        %s181 = smul.addr %s180, 4
        %s182 = scalar_lea.vmem %s0, %s181
        %p183 = pneg %p43
        %p184 = pneg %p40
        %p185 = pneg %p64
        %p186 = pneg %p61
        %p187 = pneg %p85
        %p188 = pneg %p82
        %p189 = pneg %p111
        %p190 = pneg %p108
        %s191 = sand.u32 %s98, 1
        %s192 = scalar_lea.sflag [#allocation3], %s191
        %s193 = sand.u32 %s98, 1
        %s194 = smul.addr %s193, 8
        %s195 = scalar_lea.vmem [#allocation2], %s194
        %p196 = pneg %p137
        %p197 = pneg %p134
        %s198 = sand.u32 %s124, 1
        %s199 = scalar_lea.sflag [#allocation5], %s198
        %s200 = sand.u32 %s124, 1
        %s201 = smul.addr %s200, 8
        %s202 = scalar_lea.vmem [#allocation4], %s201
        %s203 = smul.u32 2, %s22
        %p204 = scmp.lt.s32.totalorder %s203, 5
        %s205 = scalar_select %p204, %s203, 5
        %s206 = smul.addr %s205, 4
        %s207 = scalar_lea.vmem %s0, %s206
        %s208 = smul.u32 2, %s22
        %s209 = smul.u32 2, %s22
        %s210 = smul.u32 2, %s22
        %v212 = vld [vmem:[%s207] sm:$0xf]
        %v213 = vld [vmem:[%s207 + $0x4] sm:$0xf]
        %v214 = vld [vmem:[%s1] sm:$0xff]
        %v215 = vld [vmem:[%s1 + $0x8] sm:$0xff]
        %v216 = vld [vmem:[%s2] sm:$0x3]
        %v218 = vperm.slane %v216, 0
        %v219 = vperm.slane %v216, 1
        %v224 = vunpack.c.l.b16 %v212
        %v225 = vunpack.c.l.b16 %v213
        %v226 = vpack.c.b16 %v225, %v224
        %v229 = vunpack.c.l.b16 %v214
        %v230 = vunpack.c.h.b16 %v214
        %v231 = vunpack.c.l.b16 %v215
        %v232 = vunpack.c.h.b16 %v215
        %v233 = vpack.c.b16 %v231, %v229
        %v234 = vpack.c.b16 %v232, %v230
        %vm237 = vcmask 130048
        %v239 = vsel %vm237, %v226, 0
        %241 = vmatpush.bf16.msra.mxu0 0
        %242 = vmatpush.bf16.msra.mxu0 0
        %243 = vmatpush.bf16.msra.mxu0 0
        %244 = vmatpush.bf16.msra.mxu0 0
        %245 = vmatpush.bf16.msra.mxu0 0
        %246 = vmatpush.bf16.msra.mxu0 0
        %247 = vmatpush.bf16.msra.mxu0 0
        %248 = vmatpush.bf16.msra.mxu0 %v233
        %249 = vmatmul.bf16.gmra.mxu0 %v239
        %v250 = vpop.f32.mrf.mxu0
        %v251 = vadd.f32 %v218, %v250
        %v252 = vpop.f32.mrf.mxu0
        %v253 = vadd.f32 %v218, %v252
        %254 = vdwg.mxu0
        %255 = vmatpush.bf16.msra.mxu0 0
        %256 = vmatpush.bf16.msra.mxu0 0
        %257 = vmatpush.bf16.msra.mxu0 0
        %258 = vmatpush.bf16.msra.mxu0 0
        %259 = vmatpush.bf16.msra.mxu0 0
        %260 = vmatpush.bf16.msra.mxu0 0
        %261 = vmatpush.bf16.msra.mxu0 0
        %262 = vmatpush.bf16.msra.mxu0 %v234
        %263 = vmatmul.bf16.gmra.mxu0 %v239
        %v264 = vpop.f32.mrf.mxu0
        %v265 = vadd.f32 %v219, %v264
        %v266 = vpop.f32.mrf.mxu0
        %v267 = vadd.f32 %v219, %v266
        %268 = vdwg.mxu0
        %v269 = vpack.c.bf16 %v251, %v251
        %v270 = vpack.c.bf16 %v253, %v253
        %271 = vst [vmem:[%s195] sm:$0xf] %v269
        %272 = vst [vmem:[%s195 + $0x4] sm:$0xf] %v270
        %v273 = vpack.c.bf16 %v265, %v265
        %v274 = vpack.c.bf16 %v267, %v267
        %275 = vst [vmem:[%s202] sm:$0xf] %v273
        %276 = vst [vmem:[%s202 + $0x4] sm:$0xf] %v274
        %s277 = sand.u32 %s98, 1
        %s278 = scalar_lea.sflag [#allocation3], %s277
        %s279 = sand.u32 %s98, 1
        %s280 = smul.addr %s279, 8
        %s281 = scalar_lea.vmem [#allocation2], %s280
        %s282 = sand.u32 %s124, 1
        %s283 = scalar_lea.sflag [#allocation5], %s282
        %s284 = sand.u32 %s124, 1
        %s285 = smul.addr %s284, 8
        %s286 = scalar_lea.vmem [#allocation4], %s285
        // Predicated region
        $region33: #{tpu_custom_call.1} parent=31 // pred_check
          %p287 = pneg %p108
        $region34: #{tpu_custom_call.1} parent=31 // pred_check_branch
          %289 = sbr.rel (%p287) target = $region36
        $region35: #{tpu_custom_call.1} parent=31 // pred_region
          %s290 = smul.u32 2, %s22
          %292 = vsyncadd %s278, 0
          %s293 = smul.addr %s290, 4
          %s294 = scalar_lea.hbm %s3, %s293
          %s295 = sshll.u32 %s281, 4
          %s296 = int_to_ptr.vmem [resolvable:$true] %s295
          %s297 = sshll.u32 %s294, 4
          %s298 = int_to_ptr.hbm [resolvable:$true] %s297
          %303 = dma.vmem_to_hbm [thread:$0]  %s296, 128, %s298, %s278, 64, 64, 4
        $region36: #{tpu_custom_call.1} parent=31 // pred_fallthru
          _
        // Predicated region
        $region37: #{tpu_custom_call.1} parent=31 // pred_check
          %p304 = pneg %p134
        $region38: #{tpu_custom_call.1} parent=31 // pred_check_branch
          %306 = sbr.rel (%p304) target = $region40
        $region39: #{tpu_custom_call.1} parent=31 // pred_region
          %s307 = smul.u32 2, %s22
          %309 = vsyncadd %s283, 0
          %s310 = smul.addr %s307, 4
          %s311 = scalar_lea.hbm %s4, %s310
          %s312 = sshll.u32 %s286, 4
          %s313 = int_to_ptr.vmem [resolvable:$true] %s312
          %s314 = sshll.u32 %s311, 4
          %s315 = int_to_ptr.hbm [resolvable:$true] %s314
          %320 = dma.vmem_to_hbm [thread:$0]  %s313, 128, %s315, %s283, 64, 64, 4
        $region40: #{tpu_custom_call.1} parent=31 // pred_fallthru
          _
      $region32: #{tpu_custom_call.1} parent=5 // pred_fallthru
        _
      %p321 = scmp.le.s32.totalorder 2, %s17
      // Predicated region
      $region41: #{tpu_custom_call.1} parent=5 // pred_check
        %p322 = pneg %p321
      $region42: #{tpu_custom_call.1} parent=5 // pred_check_branch
        %324 = sbr.rel (%p322) target = $region44
      $region43: #{tpu_custom_call.1} parent=5 // pred_region
        %s325 = ssub.s32 %s17, 2
        // Predicated region
        $region45: #{tpu_custom_call.1} parent=43 // pred_check
          %p326 = pneg %p114
        $region46: #{tpu_custom_call.1} parent=43 // pred_check_branch
          %328 = sbr.rel (%p326) target = $region48
        $region47: #{tpu_custom_call.1} parent=43 // pred_region
          %s329 = sand.u32 %s99, 1
          %s330 = scalar_lea.sflag [#allocation3], %s329
          %s331 = sand.u32 %s99, 1
          %s332 = smul.addr %s331, 8
          %s333 = scalar_lea.vmem [#allocation2], %s332
          %335 = dma.done %s330, 128
        $region48: #{tpu_custom_call.1} parent=43 // pred_fallthru
          _
        // Predicated region
        $region49: #{tpu_custom_call.1} parent=43 // pred_check
          %p336 = pneg %p140
        $region50: #{tpu_custom_call.1} parent=43 // pred_check_branch
          %338 = sbr.rel (%p336) target = $region52
        $region51: #{tpu_custom_call.1} parent=43 // pred_region
          %s339 = sand.u32 %s125, 1
          %s340 = scalar_lea.sflag [#allocation5], %s339
          %s341 = sand.u32 %s125, 1
          %s342 = smul.addr %s341, 8
          %s343 = scalar_lea.vmem [#allocation4], %s342
          %345 = dma.done %s340, 128
        $region52: #{tpu_custom_call.1} parent=43 // pred_fallthru
          _
      $region44: #{tpu_custom_call.1} parent=5 // pred_fallthru
        _
    $region6: #{tpu_custom_call.1} parent=1 // loop_footer
      %s21 = sadd.s32 1, %s17
    $region7: #{tpu_custom_call.1} parent=1 // loop_footer_branch
      %16 = sbr.rel target = $region3
    $region8: #{tpu_custom_call.1} parent=1 // loop_exit
      _
    %346 = vsyncpa [#allocation3], 1
    %s347 = scalar_lea.sflag [#allocation3], 1
    %348 = vsyncpa %s347, 1
    %349 = vsyncpa [#allocation5], 1
    %s350 = scalar_lea.sflag [#allocation5], 1
    %351 = vsyncpa %s350, 1

</llo_original>
